<compile_context>
chip_gen: v6e
topology: v6e:2x2x1
jax: 0.10.0
libtpu: 0.0.40
codegen_flags: <defaults>
</compile_context>

<pallas_src>
import jax
import jax.numpy as jnp
from jax.experimental import pallas as pl
from jax.experimental.pallas import tpu as pltpu

HIDDEN = 256        # stand-in for base.config.hidden_size
EMB_DIM = 512       # cfg.emb_dim (HUSE uses 512)
SEQ_TILE = 2048     # rows of sequence per grid step for long sequences


def _round_up(x, m):
    return ((x + m - 1) // m) * m


# -----------------------------------------------------------------------------
# Fused kernel:  masked mean-pool over the sequence (grid reduction over S tiles)
#                + classifier Linear(hidden -> emb_dim) in the finalize step.
#
#   h_ref   : (B, TS, H)  bf16  sequence tile of last_hidden_states
#   m_ref   : (B, 1, TS)  bf16  attention-mask tile (padded positions are 0)
#   cnt_ref : (B, 1)      f32   precomputed per-row mask counts
#   w_ref   : (H, E)      bf16  classifier weight (torch weight.T)
#   b_ref   : (1, E)      f32   classifier bias
#   o_ref   : (B, E)      f32   output embedding (same block for every grid step)
#   acc_ref : (B, 1, H)   f32   VMEM scratch — running masked sum of hidden states
# -----------------------------------------------------------------------------
def _pool_clf_kernel(h_ref, m_ref, cnt_ref, w_ref, b_ref, o_ref, acc_ref):
    step = pl.program_id(0)

    @pl.when(step == 0)
    def _():
        acc_ref[...] = jnp.zeros_like(acc_ref)

    # Masked partial sum for this sequence tile as an MXU contraction:
    #   (B, 1, TS) bf16 @ (B, TS, H) bf16 -> (B, 1, H), accumulated in f32.
    acc_ref[...] += jnp.einsum(
        "bqs,bsh->bqh", m_ref[...], h_ref[...],
        preferred_element_type=jnp.float32)

    @pl.when(step == pl.num_programs(0) - 1)
    def _():
        denom = jnp.maximum(cnt_ref[...], 1e-9)            # torch.clamp(min=1e-9), (B, 1)
        inv = (1.0 / denom)[:, :, None]                    # exact divide, one-off (B,1,1)
        pooled = (acc_ref[...] * inv)[:, 0, :]             # (B, H) mean embeddings, f32
        # Dropout(p=0.3) is identity at inference.
        out = jnp.dot(pooled.astype(jnp.bfloat16), w_ref[...],
                      preferred_element_type=jnp.float32)  # (B, E) on the MXU
        o_ref[...] = (out + b_ref[...]).astype(o_ref.dtype)


def text_tower_forward(last_hidden_states, attention_mask, params, *, seq_tile=SEQ_TILE):
    """TextTower.forward given the base model's last_hidden_states."""
    B, S, H = last_hidden_states.shape
    E = params["clf_w"].shape[1]

    # Large activation + mask + weight travel to the kernel in bf16
    # (mask values 0/1 are exact in bf16); all accumulation is f32 inside.
    h = last_hidden_states.astype(jnp.bfloat16)
    m = attention_mask.astype(jnp.bfloat16)[:, None, :]                  # (B, 1, S)
    counts = attention_mask.astype(jnp.float32).sum(axis=-1).reshape(B, 1)
    w = params["clf_w"].astype(jnp.bfloat16)                             # (H, E)
    b = params["clf_b"].astype(jnp.float32).reshape(1, E)

    # Sequence tile: multiple of 16 (bf16 sublane packing); whole sequence in one
    # step when it fits, otherwise a lane-aligned (mult. of 128) streaming tile.
    tile = min(seq_tile, _round_up(S, 16))
    if tile < S:
        tile = _round_up(tile, 128)
    s_pad = _round_up(S, tile)
    if s_pad != S:
        # Padded positions carry mask 0, so the masked mean stays exact.
        h = jnp.pad(h, ((0, 0), (0, s_pad - S), (0, 0)))
        m = jnp.pad(m, ((0, 0), (0, 0), (0, s_pad - S)))

    grid = (s_pad // tile,)

    return pl.pallas_call(
        _pool_clf_kernel,
        out_shape=jax.ShapeDtypeStruct((B, E), jnp.float32),
        grid_spec=pltpu.PrefetchScalarGridSpec(
            num_scalar_prefetch=0,
            grid=grid,
            in_specs=[
                pl.BlockSpec((B, tile, H), lambda s: (0, s, 0)),   # hidden tile (bf16)
                pl.BlockSpec((B, 1, tile), lambda s: (0, 0, s)),   # mask tile (bf16)
                pl.BlockSpec((B, 1), lambda s: (0, 0)),            # mask counts (f32)
                pl.BlockSpec((H, E), lambda s: (0, 0)),            # clf weight (bf16, resident)
                pl.BlockSpec((1, E), lambda s: (0, 0)),            # clf bias (f32)
            ],
            out_specs=pl.BlockSpec((B, E), lambda s: (0, 0)),      # accumulator-style output
            scratch_shapes=[
                pltpu.VMEM((B, 1, H), jnp.float32),                # masked-sum accumulator
            ],
        ),
        compiler_params=pltpu.CompilerParams(
            dimension_semantics=("arbitrary",),     # sequence axis is a reduction
            vmem_limit_bytes=32 * 1024 * 1024,      # safe on v5e/v6e/v7x
        ),
    )(h, m, counts, w, b)


# -----------------------------------------------------------------------------
# Parameters (classifier head only; the pretrained base is out of scope, see TODO).
# torch: nn.Linear(hidden_size, emb_dim) -> weight (E, H), bias (E,);  y = x @ W.T + b
# -----------------------------------------------------------------------------
def init_params(key, hidden=HIDDEN, emb_dim=EMB_DIM):
    k1, k2 = jax.random.split(key)
    w = 0.02 * jax.random.normal(k1, (emb_dim, hidden), jnp.float32)
    b = 0.02 * jax.random.normal(k2, (emb_dim,), jnp.float32)
    return dict(clf_w=w.T, clf_b=b)   # (H, E), (E,)


def _reference(last_hidden_f32, mask_f32, w_f32, b_f32):
    me = mask_f32[:, :, None]
    sum_emb = jnp.sum(last_hidden_f32 * me, axis=1)
    sum_mask = jnp.clip(jnp.sum(me, axis=1), 1e-9, None)
    pooled = sum_emb / sum_mask
    return pooled @ w_f32 + b_f32


if __name__ == "__main__":
    key = jax.random.PRNGKey(0)
    kp, kh = jax.random.split(key)

    B, S, H, E = 2, 500, HIDDEN, EMB_DIM   # S not a tile multiple -> exercises ragged pad
    params = init_params(kp, hidden=H, emb_dim=E)

    last_hidden = jax.random.normal(kh, (B, S, H), jnp.float32)
    lengths = jnp.array([500, 123], dtype=jnp.int32)
    attention_mask = (jnp.arange(S)[None, :] < lengths[:, None]).astype(jnp.int32)

    fwd = jax.jit(text_tower_forward)
    out = jax.block_until_ready(fwd(last_hidden, attention_mask, params))

    # Reference on the same bf16-quantized activation & weight (kernel streams bf16;
    # self-consistent comparison — a pure-f32 torch forward differs by bf16 rounding).
    ref = _reference(
        last_hidden.astype(jnp.bfloat16).astype(jnp.float32),
        attention_mask.astype(jnp.float32),
        params["clf_w"].astype(jnp.bfloat16).astype(jnp.float32),
        params["clf_b"],
    )

    assert out.shape == (B, E), out.shape
    assert bool(jnp.all(jnp.isfinite(out)))
    assert bool(jnp.allclose(out, ref, rtol=2e-2, atol=2e-3)), float(
        jnp.max(jnp.abs(out - ref))
    )
    print("KERNEL_OK")
</pallas_src>

<mosaic_0001>
module attributes {stable_mosaic.version = 11 : i64} {
  func.func @_pool_clf_kernel(%arg0: i32, %arg1: memref<2x512x256xbf16, #tpu.memory_space<vmem>>, %arg2: memref<2x1x512xbf16, #tpu.memory_space<vmem>>, %arg3: memref<2x1xf32, #tpu.memory_space<vmem>>, %arg4: memref<256x512xbf16, #tpu.memory_space<vmem>>, %arg5: memref<1x512xf32, #tpu.memory_space<vmem>>, %arg6: memref<2x512xf32, #tpu.memory_space<vmem>>, %arg7: memref<2x1x256xf32, #tpu.memory_space<vmem>>) attributes {dimension_semantics = [#tpu.dimension_semantics<arbitrary>], iteration_bounds = array<i64: 1>, scalar_prefetch = 0 : i64, scratch_operands = 1 : i64, tpu.core_type = #tpu.core_type<tc>, window_params = [{transform_indices = @transform_0, window_bounds = array<i64: 2, 512, 256>}, {transform_indices = @transform_1, window_bounds = array<i64: 2, 1, 512>}, {pipeline_mode = #tpu.pipeline_mode<synchronous>, transform_indices = @transform_2, window_bounds = array<i64: 2, 1>}, {pipeline_mode = #tpu.pipeline_mode<synchronous>, transform_indices = @transform_3, window_bounds = array<i64: 256, 512>}, {pipeline_mode = #tpu.pipeline_mode<synchronous>, transform_indices = @transform_4, window_bounds = array<i64: 1, 512>}, {pipeline_mode = #tpu.pipeline_mode<synchronous>, transform_indices = @transform_5, window_bounds = array<i64: 2, 512>}]} {
    %c0_i32 = arith.constant 0 : i32
    %0 = arith.cmpi eq, %arg0, %c0_i32 : i32
    %1 = arith.extui %0 : i1 to i32
    %c0_i32_0 = arith.constant 0 : i32
    %2 = arith.cmpi ne, %1, %c0_i32_0 : i32
    scf.if %2 {
      %cst_14 = arith.constant 0.000000e+00 : f32
      %12 = vector.broadcast %cst_14 : f32 to vector<2x1x256xf32>
      %c0_15 = arith.constant 0 : index
      %c0_16 = arith.constant 0 : index
      %c0_17 = arith.constant 0 : index
      %13 = vector.load %arg7[%c0_15, %c0_16, %c0_17] : memref<2x1x256xf32, #tpu.memory_space<vmem>>, vector<2x1x256xf32>
      tpu.vector_store %arg7[%c0_15, %c0_16, %c0_17], %12 {strides = array<i32>} : memref<2x1x256xf32, #tpu.memory_space<vmem>>, vector<2x1x256xf32>,
    } else {
    }
    %c0 = arith.constant 0 : index
    %c0_1 = arith.constant 0 : index
    %c0_2 = arith.constant 0 : index
    %3 = vector.load %arg7[%c0, %c0_1, %c0_2] : memref<2x1x256xf32, #tpu.memory_space<vmem>>, vector<2x1x256xf32>
    %c0_3 = arith.constant 0 : index
    %c0_4 = arith.constant 0 : index
    %c0_5 = arith.constant 0 : index
    %4 = vector.load %arg2[%c0_3, %c0_4, %c0_5] : memref<2x1x512xbf16, #tpu.memory_space<vmem>>, vector<2x1x512xbf16>
    %c0_6 = arith.constant 0 : index
    %c0_7 = arith.constant 0 : index
    %c0_8 = arith.constant 0 : index
    %5 = vector.load %arg1[%c0_6, %c0_7, %c0_8] : memref<2x512x256xbf16, #tpu.memory_space<vmem>>, vector<2x512x256xbf16>
    "tpu.trace_start"() <{level = 10 : i32, message = "bqs,bsh->bqh"}> : () -> ()
    %cst = arith.constant dense<0.000000e+00> : vector<2x1x256xf32>
    %6 = tpu.matmul %4, %5, %cst {dimension_numbers = #tpu.dot_dimension_numbers<[2], [1], [1], [2], [0, 0, 0, 1, 1, 2], [0], [0]>} : vector<2x1x512xbf16>, vector<2x512x256xbf16>, vector<2x1x256xf32> -> vector<2x1x256xf32>
    "tpu.trace_stop"() : () -> ()
    %7 = arith.addf %3, %6 : vector<2x1x256xf32>
    %c0_9 = arith.constant 0 : index
    %c0_10 = arith.constant 0 : index
    %c0_11 = arith.constant 0 : index
    %8 = vector.load %arg7[%c0_9, %c0_10, %c0_11] : memref<2x1x256xf32, #tpu.memory_space<vmem>>, vector<2x1x256xf32>
    tpu.vector_store %arg7[%c0_9, %c0_10, %c0_11], %7 {strides = array<i32>} : memref<2x1x256xf32, #tpu.memory_space<vmem>>, vector<2x1x256xf32>,
    %c0_i32_12 = arith.constant 0 : i32
    %9 = arith.cmpi eq, %arg0, %c0_i32_12 : i32
    %10 = arith.extui %9 : i1 to i32
    %c0_i32_13 = arith.constant 0 : i32
    %11 = arith.cmpi ne, %10, %c0_i32_13 : i32
    scf.if %11 {
      %c0_14 = arith.constant 0 : index
      %c0_15 = arith.constant 0 : index
      %12 = vector.load %arg3[%c0_14, %c0_15] : memref<2x1xf32, #tpu.memory_space<vmem>>, vector<2x1xf32>
      %cst_16 = arith.constant 9.99999971E-10 : f32
      %13 = vector.broadcast %cst_16 : f32 to vector<2x1xf32>
      %14 = arith.maximumf %12, %13 : vector<2x1xf32>
      %cst_17 = arith.constant 1.000000e+00 : f32
      %15 = vector.broadcast %cst_17 : f32 to vector<2x1xf32>
      %16 = arith.divf %15, %14 : vector<2x1xf32>
      %17 = vector.shape_cast %16 : vector<2x1xf32> to vector<2x1x1xf32>
      %c0_18 = arith.constant 0 : index
      %c0_19 = arith.constant 0 : index
      %c0_20 = arith.constant 0 : index
      %18 = vector.load %arg7[%c0_18, %c0_19, %c0_20] : memref<2x1x256xf32, #tpu.memory_space<vmem>>, vector<2x1x256xf32>
      %19 = vector.broadcast %17 : vector<2x1x1xf32> to vector<2x1x256xf32>
      %20 = arith.mulf %18, %19 : vector<2x1x256xf32>
      %21 = vector.shape_cast %20 : vector<2x1x256xf32> to vector<2x256xf32>
      %22 = arith.truncf %21 : vector<2x256xf32> to vector<2x256xbf16>
      %c0_21 = arith.constant 0 : index
      %c0_22 = arith.constant 0 : index
      %23 = vector.load %arg4[%c0_21, %c0_22] : memref<256x512xbf16, #tpu.memory_space<vmem>>, vector<256x512xbf16>
      %cst_23 = arith.constant dense<0.000000e+00> : vector<2x512xf32>
      %24 = tpu.matmul %22, %23, %cst_23 {dimension_numbers = #tpu.dot_dimension_numbers<[1], [0], [0], [1], [0, 0, 1, 1], [], []>} : vector<2x256xbf16>, vector<256x512xbf16>, vector<2x512xf32> -> vector<2x512xf32>
      %c0_24 = arith.constant 0 : index
      %c0_25 = arith.constant 0 : index
      %25 = vector.load %arg5[%c0_24, %c0_25] : memref<1x512xf32, #tpu.memory_space<vmem>>, vector<1x512xf32>
      %26 = vector.broadcast %25 : vector<1x512xf32> to vector<2x512xf32>
      %27 = arith.addf %24, %26 : vector<2x512xf32>
      %c0_26 = arith.constant 0 : index
      %c0_27 = arith.constant 0 : index
      %28 = vector.load %arg6[%c0_26, %c0_27] : memref<2x512xf32, #tpu.memory_space<vmem>>, vector<2x512xf32>
      tpu.vector_store %arg6[%c0_26, %c0_27], %27 {strides = array<i32>} : memref<2x512xf32, #tpu.memory_space<vmem>>, vector<2x512xf32>,
    } else {
    }
    return
  }
  func.func @transform_0(%arg0: i32) -> (i32, i32, i32) {
    %c0_i32 = arith.constant 0 : i32
    %c0_i32_0 = arith.constant 0 : i32
    %c0_i32_1 = arith.constant 0 : i32
    return %c0_i32, %arg0, %c0_i32_0 : i32, i32, i32
  }
  func.func @transform_1(%arg0: i32) -> (i32, i32, i32) {
    %c0_i32 = arith.constant 0 : i32
    %c0_i32_0 = arith.constant 0 : i32
    %c0_i32_1 = arith.constant 0 : i32
    return %c0_i32, %c0_i32_0, %arg0 : i32, i32, i32
  }
  func.func @transform_2(%arg0: i32) -> (i32, i32) {
    %c0_i32 = arith.constant 0 : i32
    %c0_i32_0 = arith.constant 0 : i32
    %c0_i32_1 = arith.constant 0 : i32
    return %c0_i32, %c0_i32_0 : i32, i32
  }
  func.func @transform_3(%arg0: i32) -> (i32, i32) {
    %c0_i32 = arith.constant 0 : i32
    %c0_i32_0 = arith.constant 0 : i32
    %c0_i32_1 = arith.constant 0 : i32
    return %c0_i32, %c0_i32_0 : i32, i32
  }
  func.func @transform_4(%arg0: i32) -> (i32, i32) {
    %c0_i32 = arith.constant 0 : i32
    %c0_i32_0 = arith.constant 0 : i32
    %c0_i32_1 = arith.constant 0 : i32
    return %c0_i32, %c0_i32_0 : i32, i32
  }
  func.func @transform_5(%arg0: i32) -> (i32, i32) {
    %c0_i32 = arith.constant 0 : i32
    %c0_i32_0 = arith.constant 0 : i32
    %c0_i32_1 = arith.constant 0 : i32
    return %c0_i32, %c0_i32_0 : i32, i32
  }
}

</mosaic_0001>

<llo_original>
// kernel: text_tower_forward.1
$region0: #{text_tower_forward.1}
  #allocation0 [shape = 'u32[]', space=smem, size = 0x4, offset = 0x4, fixed_abs, tag = 'smem constant byte address 0x4 - core index']
  #allocation1 [shape = 'u32[144,128]{1,0:T(1,128)}', space=vmem, size = 0x12000, scoped, tag = 'internal scratch']
  #allocation2 [shape = 'f32[2,1,256]{2,1,0:T(1,128)}', space=vmem, size = 0x800, scoped, tag = 'scratch operand']
  %s0 = inlined_call_operand.vmem [shape: bf16[2,512,256], index: 0, kind: input, shape index: {}]
  %s1 = inlined_call_operand.vmem [shape: bf16[2,1,512], index: 1, kind: input, shape index: {}]
  %s2 = inlined_call_operand.vmem [shape: f32[2,1], index: 2, kind: input, shape index: {}]
  %s3 = inlined_call_operand.vmem [shape: bf16[256,512], index: 3, kind: input, shape index: {}]
  %s4 = inlined_call_operand.vmem [shape: f32[1,512], index: 4, kind: input, shape index: {}]
  %s5 = inlined_call_operand.hbm [shape: f32[2,512], index: 5, kind: output, shape index: {}]
  %s6 = sld [smem:[#allocation0]]
  $region38: #{text_tower_forward.1} parent=0
    _
  %s8 = ssub.s32 1, %s6
  %s9 = scalar_select 0, %s8, %s6
  $region1: #{text_tower_forward.1} parent=0
    #allocation3 [shape = 'u8[4096]{0}', space=vmem, size = 0x1000, scoped, tag = 'output window, operand 0, single buffered']
    #allocation4 [shape = 's32[1]{0}', space=sflag, size = 0x4, scoped, tag = 'scoped memory for text_tower_forward.1']
    %10 = vsyncpa [#allocation4], 0
    // Predicated region
    $region2: #{text_tower_forward.1} parent=1 // pred_check
      _
    $region3: #{text_tower_forward.1} parent=1 // pred_check_branch
      %12 = sbr.rel (0) target = $region5
    $region4: #{text_tower_forward.1} parent=1 // pred_region
      _
    $region5: #{text_tower_forward.1} parent=1 // pred_fallthru
      _
    // Predicated region
    $region6: #{text_tower_forward.1} parent=1 // pred_check
      _
    $region7: #{text_tower_forward.1} parent=1 // pred_check_branch
      %14 = sbr.rel (0) target = $region9
    $region8: #{text_tower_forward.1} parent=1 // pred_region
      _
    $region9: #{text_tower_forward.1} parent=1 // pred_fallthru
      _
    // Predicated region
    $region10: #{text_tower_forward.1} parent=1 // pred_check
      _
    $region11: #{text_tower_forward.1} parent=1 // pred_check_branch
      %16 = sbr.rel (0) target = $region13
    $region12: #{text_tower_forward.1} parent=1 // pred_region
      _
    $region13: #{text_tower_forward.1} parent=1 // pred_fallthru
      _
    // Predicated region
    $region14: #{text_tower_forward.1} parent=1 // pred_check
      _
    $region15: #{text_tower_forward.1} parent=1 // pred_check_branch
      %18 = sbr.rel (0) target = $region17
    $region16: #{text_tower_forward.1} parent=1 // pred_region
      _
    $region17: #{text_tower_forward.1} parent=1 // pred_fallthru
      _
    // Predicated region
    $region18: #{text_tower_forward.1} parent=1 // pred_check
      _
    $region19: #{text_tower_forward.1} parent=1 // pred_check_branch
      %20 = sbr.rel (0) target = $region21
    $region20: #{text_tower_forward.1} parent=1 // pred_region
      _
    $region21: #{text_tower_forward.1} parent=1 // pred_fallthru
      _
    %p21 = scmp.eq.s32.totalorder 0, 0
    // Predicated region
    $region22: #{text_tower_forward.1} parent=1 // pred_check
      %p22 = pneg %p21
    $region23: #{text_tower_forward.1} parent=1 // pred_check_branch
      %24 = sbr.rel (%p22) target = $region25
    $region24: #{text_tower_forward.1} parent=1 // pred_region
      %v25 = vlaneseq
      %vm26 = vcmp.ge.s32.totalorder %v25, 0
      %vm27 = vcmp.lt.s32.totalorder %v25, 256
      %vm28 = vmand %vm26, %vm27
      %29 = vst.msk [vmem:[#allocation2] sm:$0x3] %vm28, 0.0
      %30 = vst.msk [vmem:[#allocation2 + $0x2] sm:$0x3] %vm28, 0.0
    $region25: #{text_tower_forward.1} parent=1 // pred_fallthru
      _
    %v31 = vld [vmem:[#allocation2] sm:$0x3]
    %v32 = vld [vmem:[#allocation2 + $0x2] sm:$0x3]
    %v33 = vld [vmem:[%s1] sm:$0xf]
    %v34 = vld [vmem:[%s1 + $0x4] sm:$0xf]
    %v35 = vld [vmem:[%s0] sm:$0xff]
    %v36 = vld [vmem:[%s0 + $0x8] sm:$0xff]
    %v37 = vld [vmem:[%s0 + $0x10] sm:$0xff]
    %v38 = vld [vmem:[%s0 + $0x18] sm:$0xff]
    %v39 = vld [vmem:[%s0 + $0x20] sm:$0xff]
    %v40 = vld [vmem:[%s0 + $0x28] sm:$0xff]
    %v41 = vld [vmem:[%s0 + $0x30] sm:$0xff]
    %v42 = vld [vmem:[%s0 + $0x38] sm:$0xff]
    %v43 = vld [vmem:[%s0 + $0x40] sm:$0xff]
    %v44 = vld [vmem:[%s0 + $0x48] sm:$0xff]
    %v45 = vld [vmem:[%s0 + $0x50] sm:$0xff]
    %v46 = vld [vmem:[%s0 + $0x58] sm:$0xff]
    %v47 = vld [vmem:[%s0 + $0x60] sm:$0xff]
    %v48 = vld [vmem:[%s0 + $0x68] sm:$0xff]
    %v49 = vld [vmem:[%s0 + $0x70] sm:$0xff]
    %v50 = vld [vmem:[%s0 + $0x78] sm:$0xff]
    %v51 = vld [vmem:[%s0 + $0x80] sm:$0xff]
    %v52 = vld [vmem:[%s0 + $0x88] sm:$0xff]
    %v53 = vld [vmem:[%s0 + $0x90] sm:$0xff]
    %v54 = vld [vmem:[%s0 + $0x98] sm:$0xff]
    %v55 = vld [vmem:[%s0 + $0xa0] sm:$0xff]
    %v56 = vld [vmem:[%s0 + $0xa8] sm:$0xff]
    %v57 = vld [vmem:[%s0 + $0xb0] sm:$0xff]
    %v58 = vld [vmem:[%s0 + $0xb8] sm:$0xff]
    %v59 = vld [vmem:[%s0 + $0xc0] sm:$0xff]
    %v60 = vld [vmem:[%s0 + $0xc8] sm:$0xff]
    %v61 = vld [vmem:[%s0 + $0xd0] sm:$0xff]
    %v62 = vld [vmem:[%s0 + $0xd8] sm:$0xff]
    %v63 = vld [vmem:[%s0 + $0xe0] sm:$0xff]
    %v64 = vld [vmem:[%s0 + $0xe8] sm:$0xff]
    %v65 = vld [vmem:[%s0 + $0xf0] sm:$0xff]
    %v66 = vld [vmem:[%s0 + $0xf8] sm:$0xff]
    %v67 = vld [vmem:[%s0 + $0x100] sm:$0xff]
    %v68 = vld [vmem:[%s0 + $0x108] sm:$0xff]
    %v69 = vld [vmem:[%s0 + $0x110] sm:$0xff]
    %v70 = vld [vmem:[%s0 + $0x118] sm:$0xff]
    %v71 = vld [vmem:[%s0 + $0x120] sm:$0xff]
    %v72 = vld [vmem:[%s0 + $0x128] sm:$0xff]
    %v73 = vld [vmem:[%s0 + $0x130] sm:$0xff]
    %v74 = vld [vmem:[%s0 + $0x138] sm:$0xff]
    %v75 = vld [vmem:[%s0 + $0x140] sm:$0xff]
    %v76 = vld [vmem:[%s0 + $0x148] sm:$0xff]
    %v77 = vld [vmem:[%s0 + $0x150] sm:$0xff]
    %v78 = vld [vmem:[%s0 + $0x158] sm:$0xff]
    %v79 = vld [vmem:[%s0 + $0x160] sm:$0xff]
    %v80 = vld [vmem:[%s0 + $0x168] sm:$0xff]
    %v81 = vld [vmem:[%s0 + $0x170] sm:$0xff]
    %v82 = vld [vmem:[%s0 + $0x178] sm:$0xff]
    %v83 = vld [vmem:[%s0 + $0x180] sm:$0xff]
    %v84 = vld [vmem:[%s0 + $0x188] sm:$0xff]
    %v85 = vld [vmem:[%s0 + $0x190] sm:$0xff]
    %v86 = vld [vmem:[%s0 + $0x198] sm:$0xff]
    %v87 = vld [vmem:[%s0 + $0x1a0] sm:$0xff]
    %v88 = vld [vmem:[%s0 + $0x1a8] sm:$0xff]
    %v89 = vld [vmem:[%s0 + $0x1b0] sm:$0xff]
    %v90 = vld [vmem:[%s0 + $0x1b8] sm:$0xff]
    %v91 = vld [vmem:[%s0 + $0x1c0] sm:$0xff]
    %v92 = vld [vmem:[%s0 + $0x1c8] sm:$0xff]
    %v93 = vld [vmem:[%s0 + $0x1d0] sm:$0xff]
    %v94 = vld [vmem:[%s0 + $0x1d8] sm:$0xff]
    %v95 = vld [vmem:[%s0 + $0x1e0] sm:$0xff]
    %v96 = vld [vmem:[%s0 + $0x1e8] sm:$0xff]
    %v97 = vld [vmem:[%s0 + $0x1f0] sm:$0xff]
    %v98 = vld [vmem:[%s0 + $0x1f8] sm:$0xff]
    %v99 = vld [vmem:[%s0 + $0x200] sm:$0xff]
    %v100 = vld [vmem:[%s0 + $0x208] sm:$0xff]
    %v101 = vld [vmem:[%s0 + $0x210] sm:$0xff]
    %v102 = vld [vmem:[%s0 + $0x218] sm:$0xff]
    %v103 = vld [vmem:[%s0 + $0x220] sm:$0xff]
    %v104 = vld [vmem:[%s0 + $0x228] sm:$0xff]
    %v105 = vld [vmem:[%s0 + $0x230] sm:$0xff]
    %v106 = vld [vmem:[%s0 + $0x238] sm:$0xff]
    %v107 = vld [vmem:[%s0 + $0x240] sm:$0xff]
    %v108 = vld [vmem:[%s0 + $0x248] sm:$0xff]
    %v109 = vld [vmem:[%s0 + $0x250] sm:$0xff]
    %v110 = vld [vmem:[%s0 + $0x258] sm:$0xff]
    %v111 = vld [vmem:[%s0 + $0x260] sm:$0xff]
    %v112 = vld [vmem:[%s0 + $0x268] sm:$0xff]
    %v113 = vld [vmem:[%s0 + $0x270] sm:$0xff]
    %v114 = vld [vmem:[%s0 + $0x278] sm:$0xff]
    %v115 = vld [vmem:[%s0 + $0x280] sm:$0xff]
    %v116 = vld [vmem:[%s0 + $0x288] sm:$0xff]
    %v117 = vld [vmem:[%s0 + $0x290] sm:$0xff]
    %v118 = vld [vmem:[%s0 + $0x298] sm:$0xff]
    %v119 = vld [vmem:[%s0 + $0x2a0] sm:$0xff]
    %v120 = vld [vmem:[%s0 + $0x2a8] sm:$0xff]
    %v121 = vld [vmem:[%s0 + $0x2b0] sm:$0xff]
    %v122 = vld [vmem:[%s0 + $0x2b8] sm:$0xff]
    %v123 = vld [vmem:[%s0 + $0x2c0] sm:$0xff]
    %v124 = vld [vmem:[%s0 + $0x2c8] sm:$0xff]
    %v125 = vld [vmem:[%s0 + $0x2d0] sm:$0xff]
    %v126 = vld [vmem:[%s0 + $0x2d8] sm:$0xff]
    %v127 = vld [vmem:[%s0 + $0x2e0] sm:$0xff]
    %v128 = vld [vmem:[%s0 + $0x2e8] sm:$0xff]
    %v129 = vld [vmem:[%s0 + $0x2f0] sm:$0xff]
    %v130 = vld [vmem:[%s0 + $0x2f8] sm:$0xff]
    %v131 = vld [vmem:[%s0 + $0x300] sm:$0xff]
    %v132 = vld [vmem:[%s0 + $0x308] sm:$0xff]
    %v133 = vld [vmem:[%s0 + $0x310] sm:$0xff]
    %v134 = vld [vmem:[%s0 + $0x318] sm:$0xff]
    %v135 = vld [vmem:[%s0 + $0x320] sm:$0xff]
    %v136 = vld [vmem:[%s0 + $0x328] sm:$0xff]
    %v137 = vld [vmem:[%s0 + $0x330] sm:$0xff]
    %v138 = vld [vmem:[%s0 + $0x338] sm:$0xff]
    %v139 = vld [vmem:[%s0 + $0x340] sm:$0xff]
    %v140 = vld [vmem:[%s0 + $0x348] sm:$0xff]
    %v141 = vld [vmem:[%s0 + $0x350] sm:$0xff]
    %v142 = vld [vmem:[%s0 + $0x358] sm:$0xff]
    %v143 = vld [vmem:[%s0 + $0x360] sm:$0xff]
    %v144 = vld [vmem:[%s0 + $0x368] sm:$0xff]
    %v145 = vld [vmem:[%s0 + $0x370] sm:$0xff]
    %v146 = vld [vmem:[%s0 + $0x378] sm:$0xff]
    %v147 = vld [vmem:[%s0 + $0x380] sm:$0xff]
    %v148 = vld [vmem:[%s0 + $0x388] sm:$0xff]
    %v149 = vld [vmem:[%s0 + $0x390] sm:$0xff]
    %v150 = vld [vmem:[%s0 + $0x398] sm:$0xff]
    %v151 = vld [vmem:[%s0 + $0x3a0] sm:$0xff]
    %v152 = vld [vmem:[%s0 + $0x3a8] sm:$0xff]
    %v153 = vld [vmem:[%s0 + $0x3b0] sm:$0xff]
    %v154 = vld [vmem:[%s0 + $0x3b8] sm:$0xff]
    %v155 = vld [vmem:[%s0 + $0x3c0] sm:$0xff]
    %v156 = vld [vmem:[%s0 + $0x3c8] sm:$0xff]
    %v157 = vld [vmem:[%s0 + $0x3d0] sm:$0xff]
    %v158 = vld [vmem:[%s0 + $0x3d8] sm:$0xff]
    %v159 = vld [vmem:[%s0 + $0x3e0] sm:$0xff]
    %v160 = vld [vmem:[%s0 + $0x3e8] sm:$0xff]
    %v161 = vld [vmem:[%s0 + $0x3f0] sm:$0xff]
    %v162 = vld [vmem:[%s0 + $0x3f8] sm:$0xff]
    %v165 = vunpack.c.l.s4 1966171168
    %v166 = vunpack.c.0.s8 %v165
    %v167 = vlaneseq
    %v168 = vshrl.u32 %v167, 7
    %v169 = vsub.s32 %v166, %v168
    %v170 = vrot.slane %v33, %v169
    %v171 = vcombine.high %v170, %v170
    %v173 = vunpack.c.l.s4 1966171168
    %v174 = vunpack.c.0.s8 %v173
    %v175 = vlaneseq
    %v176 = vshrl.u32 %v175, 7
    %v177 = vsub.s32 %v174, %v176
    %v178 = vrot.slane %v170, %v177
    %v180 = vunpack.c.l.s4 1966171168
    %v181 = vunpack.c.0.s8 %v180
    %v182 = vlaneseq
    %v183 = vshrl.u32 %v182, 7
    %v184 = vsub.s32 %v181, %v183
    %v185 = vrot.slane %v171, %v184
    %v186 = vcombine.high %v178, %v178
    %v187 = vcombine.high %v185, %v185
    %v256 = vunpack.c.l.b16 %v35
    %v257 = vunpack.c.h.b16 %v35
    %v258 = vunpack.c.l.b16 %v36
    %v259 = vunpack.c.h.b16 %v36
    %v260 = vunpack.c.l.b16 %v37
    %v261 = vunpack.c.h.b16 %v37
    %v262 = vunpack.c.l.b16 %v38
    %v263 = vunpack.c.h.b16 %v38
    %v264 = vunpack.c.l.b16 %v39
    %v265 = vunpack.c.h.b16 %v39
    %v266 = vunpack.c.l.b16 %v40
    %v267 = vunpack.c.h.b16 %v40
    %v268 = vunpack.c.l.b16 %v41
    %v269 = vunpack.c.h.b16 %v41
    %v270 = vunpack.c.l.b16 %v42
    %v271 = vunpack.c.h.b16 %v42
    %v272 = vunpack.c.l.b16 %v43
    %v273 = vunpack.c.h.b16 %v43
    %v274 = vunpack.c.l.b16 %v44
    %v275 = vunpack.c.h.b16 %v44
    %v276 = vunpack.c.l.b16 %v45
    %v277 = vunpack.c.h.b16 %v45
    %v278 = vunpack.c.l.b16 %v46
    %v279 = vunpack.c.h.b16 %v46
    %v280 = vunpack.c.l.b16 %v47
    %v281 = vunpack.c.h.b16 %v47
    %v282 = vunpack.c.l.b16 %v48
    %v283 = vunpack.c.h.b16 %v48
    %v284 = vunpack.c.l.b16 %v49
    %v285 = vunpack.c.h.b16 %v49
    %v286 = vunpack.c.l.b16 %v50
    %v287 = vunpack.c.h.b16 %v50
    %v288 = vunpack.c.l.b16 %v51
    %v289 = vunpack.c.h.b16 %v51
    %v290 = vunpack.c.l.b16 %v52
    %v291 = vunpack.c.h.b16 %v52
    %v292 = vunpack.c.l.b16 %v53
    %v293 = vunpack.c.h.b16 %v53
    %v294 = vunpack.c.l.b16 %v54
    %v295 = vunpack.c.h.b16 %v54
    %v296 = vunpack.c.l.b16 %v55
    %v297 = vunpack.c.h.b16 %v55
    %v298 = vunpack.c.l.b16 %v56
    %v299 = vunpack.c.h.b16 %v56
    %v300 = vunpack.c.l.b16 %v57
    %v301 = vunpack.c.h.b16 %v57
    %v302 = vunpack.c.l.b16 %v58
    %v303 = vunpack.c.h.b16 %v58
    %v304 = vunpack.c.l.b16 %v59
    %v305 = vunpack.c.h.b16 %v59
    %v306 = vunpack.c.l.b16 %v60
    %v307 = vunpack.c.h.b16 %v60
    %v308 = vunpack.c.l.b16 %v61
    %v309 = vunpack.c.h.b16 %v61
    %v310 = vunpack.c.l.b16 %v62
    %v311 = vunpack.c.h.b16 %v62
    %v312 = vunpack.c.l.b16 %v63
    %v313 = vunpack.c.h.b16 %v63
    %v314 = vunpack.c.l.b16 %v64
    %v315 = vunpack.c.h.b16 %v64
    %v316 = vunpack.c.l.b16 %v65
    %v317 = vunpack.c.h.b16 %v65
    %v318 = vunpack.c.l.b16 %v66
    %v319 = vunpack.c.h.b16 %v66
    %v320 = vunpack.c.l.b16 %v67
    %v321 = vunpack.c.h.b16 %v67
    %v322 = vunpack.c.l.b16 %v68
    %v323 = vunpack.c.h.b16 %v68
    %v324 = vunpack.c.l.b16 %v69
    %v325 = vunpack.c.h.b16 %v69
    %v326 = vunpack.c.l.b16 %v70
    %v327 = vunpack.c.h.b16 %v70
    %v328 = vunpack.c.l.b16 %v71
    %v329 = vunpack.c.h.b16 %v71
    %v330 = vunpack.c.l.b16 %v72
    %v331 = vunpack.c.h.b16 %v72
    %v332 = vunpack.c.l.b16 %v73
    %v333 = vunpack.c.h.b16 %v73
    %v334 = vunpack.c.l.b16 %v74
    %v335 = vunpack.c.h.b16 %v74
    %v336 = vunpack.c.l.b16 %v75
    %v337 = vunpack.c.h.b16 %v75
    %v338 = vunpack.c.l.b16 %v76
    %v339 = vunpack.c.h.b16 %v76
    %v340 = vunpack.c.l.b16 %v77
    %v341 = vunpack.c.h.b16 %v77
    %v342 = vunpack.c.l.b16 %v78
    %v343 = vunpack.c.h.b16 %v78
    %v344 = vunpack.c.l.b16 %v79
    %v345 = vunpack.c.h.b16 %v79
    %v346 = vunpack.c.l.b16 %v80
    %v347 = vunpack.c.h.b16 %v80
    %v348 = vunpack.c.l.b16 %v81
    %v349 = vunpack.c.h.b16 %v81
    %v350 = vunpack.c.l.b16 %v82
    %v351 = vunpack.c.h.b16 %v82
    %v352 = vunpack.c.l.b16 %v83
    %v353 = vunpack.c.h.b16 %v83
    %v354 = vunpack.c.l.b16 %v84
    %v355 = vunpack.c.h.b16 %v84
    %v356 = vunpack.c.l.b16 %v85
    %v357 = vunpack.c.h.b16 %v85
    %v358 = vunpack.c.l.b16 %v86
    %v359 = vunpack.c.h.b16 %v86
    %v360 = vunpack.c.l.b16 %v87
    %v361 = vunpack.c.h.b16 %v87
    %v362 = vunpack.c.l.b16 %v88
    %v363 = vunpack.c.h.b16 %v88
    %v364 = vunpack.c.l.b16 %v89
    %v365 = vunpack.c.h.b16 %v89
    %v366 = vunpack.c.l.b16 %v90
    %v367 = vunpack.c.h.b16 %v90
    %v368 = vunpack.c.l.b16 %v91
    %v369 = vunpack.c.h.b16 %v91
    %v370 = vunpack.c.l.b16 %v92
    %v371 = vunpack.c.h.b16 %v92
    %v372 = vunpack.c.l.b16 %v93
    %v373 = vunpack.c.h.b16 %v93
    %v374 = vunpack.c.l.b16 %v94
    %v375 = vunpack.c.h.b16 %v94
    %v376 = vunpack.c.l.b16 %v95
    %v377 = vunpack.c.h.b16 %v95
    %v378 = vunpack.c.l.b16 %v96
    %v379 = vunpack.c.h.b16 %v96
    %v380 = vunpack.c.l.b16 %v97
    %v381 = vunpack.c.h.b16 %v97
    %v382 = vunpack.c.l.b16 %v98
    %v383 = vunpack.c.h.b16 %v98
    %v384 = vpack.c.b16 %v258, %v256
    %v385 = vpack.c.b16 %v259, %v257
    %v386 = vpack.c.b16 %v262, %v260
    %v387 = vpack.c.b16 %v263, %v261
    %v388 = vpack.c.b16 %v266, %v264
    %v389 = vpack.c.b16 %v267, %v265
    %v390 = vpack.c.b16 %v270, %v268
    %v391 = vpack.c.b16 %v271, %v269
    %v392 = vpack.c.b16 %v274, %v272
    %v393 = vpack.c.b16 %v275, %v273
    %v394 = vpack.c.b16 %v278, %v276
    %v395 = vpack.c.b16 %v279, %v277
    %v396 = vpack.c.b16 %v282, %v280
    %v397 = vpack.c.b16 %v283, %v281
    %v398 = vpack.c.b16 %v286, %v284
    %v399 = vpack.c.b16 %v287, %v285
    %v400 = vpack.c.b16 %v290, %v288
    %v401 = vpack.c.b16 %v291, %v289
    %v402 = vpack.c.b16 %v294, %v292
    %v403 = vpack.c.b16 %v295, %v293
    %v404 = vpack.c.b16 %v298, %v296
    %v405 = vpack.c.b16 %v299, %v297
    %v406 = vpack.c.b16 %v302, %v300
    %v407 = vpack.c.b16 %v303, %v301
    %v408 = vpack.c.b16 %v306, %v304
    %v409 = vpack.c.b16 %v307, %v305
    %v410 = vpack.c.b16 %v310, %v308
    %v411 = vpack.c.b16 %v311, %v309
    %v412 = vpack.c.b16 %v314, %v312
    %v413 = vpack.c.b16 %v315, %v313
    %v414 = vpack.c.b16 %v318, %v316
    %v415 = vpack.c.b16 %v319, %v317
    %v416 = vpack.c.b16 %v322, %v320
    %v417 = vpack.c.b16 %v323, %v321
    %v418 = vpack.c.b16 %v326, %v324
    %v419 = vpack.c.b16 %v327, %v325
    %v420 = vpack.c.b16 %v330, %v328
    %v421 = vpack.c.b16 %v331, %v329
    %v422 = vpack.c.b16 %v334, %v332
    %v423 = vpack.c.b16 %v335, %v333
    %v424 = vpack.c.b16 %v338, %v336
    %v425 = vpack.c.b16 %v339, %v337
    %v426 = vpack.c.b16 %v342, %v340
    %v427 = vpack.c.b16 %v343, %v341
    %v428 = vpack.c.b16 %v346, %v344
    %v429 = vpack.c.b16 %v347, %v345
    %v430 = vpack.c.b16 %v350, %v348
    %v431 = vpack.c.b16 %v351, %v349
    %v432 = vpack.c.b16 %v354, %v352
    %v433 = vpack.c.b16 %v355, %v353
    %v434 = vpack.c.b16 %v358, %v356
    %v435 = vpack.c.b16 %v359, %v357
    %v436 = vpack.c.b16 %v362, %v360
    %v437 = vpack.c.b16 %v363, %v361
    %v438 = vpack.c.b16 %v366, %v364
    %v439 = vpack.c.b16 %v367, %v365
    %v440 = vpack.c.b16 %v370, %v368
    %v441 = vpack.c.b16 %v371, %v369
    %v442 = vpack.c.b16 %v374, %v372
    %v443 = vpack.c.b16 %v375, %v373
    %v444 = vpack.c.b16 %v378, %v376
    %v445 = vpack.c.b16 %v379, %v377
    %v446 = vpack.c.b16 %v382, %v380
    %v447 = vpack.c.b16 %v383, %v381
    %512 = vmatprep.subr.bf16.mxu0 %v399
    %513 = vmatpush1.bf16.msra.mxu0 %v398
    %514 = vmatprep.subr.bf16.mxu0 %v397
    %515 = vmatpush1.bf16.msra.mxu0 %v396
    %516 = vmatprep.subr.bf16.mxu0 %v395
    %517 = vmatpush1.bf16.msra.mxu0 %v394
    %518 = vmatprep.subr.bf16.mxu0 %v393
    %519 = vmatpush1.bf16.msra.mxu0 %v392
    %520 = vmatprep.subr.bf16.mxu0 %v391
    %521 = vmatpush1.bf16.msra.mxu0 %v390
    %522 = vmatprep.subr.bf16.mxu0 %v389
    %523 = vmatpush1.bf16.msra.mxu0 %v388
    %524 = vmatprep.subr.bf16.mxu0 %v387
    %525 = vmatpush1.bf16.msra.mxu0 %v386
    %526 = vmatprep.subr.bf16.mxu0 %v385
    %527 = vmatpush1.bf16.msra.mxu0 %v384
    %528 = vmatprep.subr.bf16.mxu0 %v415
    %529 = vmatpush2.bf16.msra.mxu0 %v414
    %530 = vmatprep.subr.bf16.mxu0 %v413
    %531 = vmatpush2.bf16.msra.mxu0 %v412
    %532 = vmatprep.subr.bf16.mxu0 %v411
    %533 = vmatpush2.bf16.msra.mxu0 %v410
    %534 = vmatprep.subr.bf16.mxu0 %v409
    %535 = vmatpush2.bf16.msra.mxu0 %v408
    %536 = vmatprep.subr.bf16.mxu0 %v407
    %537 = vmatpush2.bf16.msra.mxu0 %v406
    %538 = vmatprep.subr.bf16.mxu0 %v405
    %539 = vmatpush2.bf16.msra.mxu0 %v404
    %540 = vmatprep.subr.bf16.mxu0 %v403
    %541 = vmatpush2.bf16.msra.mxu0 %v402
    %542 = vmatprep.subr.bf16.mxu0 %v401
    %543 = vmatpush2.bf16.msra.mxu0 %v400
    %544 = vmatprep.mubr.bf16.mxu0 %v185
    %545 = vmatmul.mubr.bf16.gmra.mxu0 %v178
    %v546 = vpop.f32.mrf.mxu0
    %v547 = vadd.f32 0.0, %v546
    %v548 = vpop.f32.mrf.mxu0
    %v549 = vadd.f32 0.0, %v548
    %v550 = vpop.f32.mrf.mxu0
    %v551 = vpop.f32.mrf.mxu0
    %552 = vdwg.mxu0
    %553 = vmatprep.subr.bf16.mxu0 %v431
    %554 = vmatpush1.bf16.msra.mxu0 %v430
    %555 = vmatprep.subr.bf16.mxu0 %v429
    %556 = vmatpush1.bf16.msra.mxu0 %v428
    %557 = vmatprep.subr.bf16.mxu0 %v427
    %558 = vmatpush1.bf16.msra.mxu0 %v426
    %559 = vmatprep.subr.bf16.mxu0 %v425
    %560 = vmatpush1.bf16.msra.mxu0 %v424
    %561 = vmatprep.subr.bf16.mxu0 %v423
    %562 = vmatpush1.bf16.msra.mxu0 %v422
    %563 = vmatprep.subr.bf16.mxu0 %v421
    %564 = vmatpush1.bf16.msra.mxu0 %v420
    %565 = vmatprep.subr.bf16.mxu0 %v419
    %566 = vmatpush1.bf16.msra.mxu0 %v418
    %567 = vmatprep.subr.bf16.mxu0 %v417
    %568 = vmatpush1.bf16.msra.mxu0 %v416
    %569 = vmatprep.subr.bf16.mxu0 %v447
    %570 = vmatpush2.bf16.msra.mxu0 %v446
    %571 = vmatprep.subr.bf16.mxu0 %v445
    %572 = vmatpush2.bf16.msra.mxu0 %v444
    %573 = vmatprep.subr.bf16.mxu0 %v443
    %574 = vmatpush2.bf16.msra.mxu0 %v442
    %575 = vmatprep.subr.bf16.mxu0 %v441
    %576 = vmatpush2.bf16.msra.mxu0 %v440
    %577 = vmatprep.subr.bf16.mxu0 %v439
    %578 = vmatpush2.bf16.msra.mxu0 %v438
    %579 = vmatprep.subr.bf16.mxu0 %v437
    %580 = vmatpush2.bf16.msra.mxu0 %v436
    %581 = vmatprep.subr.bf16.mxu0 %v435
    %582 = vmatpush2.bf16.msra.mxu0 %v434
    %583 = vmatprep.subr.bf16.mxu0 %v433
    %584 = vmatpush2.bf16.msra.mxu0 %v432
    %585 = vmatprep.mubr.bf16.mxu0 %v187
    %586 = vmatmul.mubr.bf16.gmra.mxu0 %v186
    %v587 = vpop.f32.mrf.mxu0
    %v588 = vadd.f32 %v547, %v587
    %v589 = vpop.f32.mrf.mxu0
    %v590 = vadd.f32 %v549, %v589
    %v591 = vpop.f32.mrf.mxu0
    %v592 = vpop.f32.mrf.mxu0
    %593 = vdwg.mxu0
    %v596 = vunpack.c.l.s4 1966171168
    %v597 = vunpack.c.0.s8 %v596
    %v598 = vlaneseq
    %v599 = vshrl.u32 %v598, 7
    %v600 = vsub.s32 %v597, %v599
    %v601 = vrot.slane %v34, %v600
    %v602 = vcombine.high %v601, %v601
    %v604 = vunpack.c.l.s4 1966171168
    %v605 = vunpack.c.0.s8 %v604
    %v606 = vlaneseq
    %v607 = vshrl.u32 %v606, 7
    %v608 = vsub.s32 %v605, %v607
    %v609 = vrot.slane %v601, %v608
    %v611 = vunpack.c.l.s4 1966171168
    %v612 = vunpack.c.0.s8 %v611
    %v613 = vlaneseq
    %v614 = vshrl.u32 %v613, 7
    %v615 = vsub.s32 %v612, %v614
    %v616 = vrot.slane %v602, %v615
    %v617 = vcombine.high %v609, %v609
    %v618 = vcombine.high %v616, %v616
    %v687 = vunpack.c.l.b16 %v99
    %v688 = vunpack.c.h.b16 %v99
    %v689 = vunpack.c.l.b16 %v100
    %v690 = vunpack.c.h.b16 %v100
    %v691 = vunpack.c.l.b16 %v101
    %v692 = vunpack.c.h.b16 %v101
    %v693 = vunpack.c.l.b16 %v102
    %v694 = vunpack.c.h.b16 %v102
    %v695 = vunpack.c.l.b16 %v103
    %v696 = vunpack.c.h.b16 %v103
    %v697 = vunpack.c.l.b16 %v104
    %v698 = vunpack.c.h.b16 %v104
    %v699 = vunpack.c.l.b16 %v105
    %v700 = vunpack.c.h.b16 %v105
    %v701 = vunpack.c.l.b16 %v106
    %v702 = vunpack.c.h.b16 %v106
    %v703 = vunpack.c.l.b16 %v107
    %v704 = vunpack.c.h.b16 %v107
    %v705 = vunpack.c.l.b16 %v108
    %v706 = vunpack.c.h.b16 %v108
    %v707 = vunpack.c.l.b16 %v109
    %v708 = vunpack.c.h.b16 %v109
    %v709 = vunpack.c.l.b16 %v110
    %v710 = vunpack.c.h.b16 %v110
    %v711 = vunpack.c.l.b16 %v111
    %v712 = vunpack.c.h.b16 %v111
    %v713 = vunpack.c.l.b16 %v112
    %v714 = vunpack.c.h.b16 %v112
    %v715 = vunpack.c.l.b16 %v113
    %v716 = vunpack.c.h.b16 %v113
    %v717 = vunpack.c.l.b16 %v114
    %v718 = vunpack.c.h.b16 %v114
    %v719 = vunpack.c.l.b16 %v115
    %v720 = vunpack.c.h.b16 %v115
    %v721 = vunpack.c.l.b16 %v116
    %v722 = vunpack.c.h.b16 %v116
    %v723 = vunpack.c.l.b16 %v117
    %v724 = vunpack.c.h.b16 %v117
    %v725 = vunpack.c.l.b16 %v118
    %v726 = vunpack.c.h.b16 %v118
    %v727 = vunpack.c.l.b16 %v119
    %v728 = vunpack.c.h.b16 %v119
    %v729 = vunpack.c.l.b16 %v120
    %v730 = vunpack.c.h.b16 %v120
    %v731 = vunpack.c.l.b16 %v121
    %v732 = vunpack.c.h.b16 %v121
    %v733 = vunpack.c.l.b16 %v122
    %v734 = vunpack.c.h.b16 %v122
    %v735 = vunpack.c.l.b16 %v123
    %v736 = vunpack.c.h.b16 %v123
    %v737 = vunpack.c.l.b16 %v124
    %v738 = vunpack.c.h.b16 %v124
    %v739 = vunpack.c.l.b16 %v125
    %v740 = vunpack.c.h.b16 %v125
    %v741 = vunpack.c.l.b16 %v126
    %v742 = vunpack.c.h.b16 %v126
    %v743 = vunpack.c.l.b16 %v127
    %v744 = vunpack.c.h.b16 %v127
    %v745 = vunpack.c.l.b16 %v128
    %v746 = vunpack.c.h.b16 %v128
    %v747 = vunpack.c.l.b16 %v129
    %v748 = vunpack.c.h.b16 %v129
    %v749 = vunpack.c.l.b16 %v130
    %v750 = vunpack.c.h.b16 %v130
    %v751 = vunpack.c.l.b16 %v131
    %v752 = vunpack.c.h.b16 %v131
    %v753 = vunpack.c.l.b16 %v132
    %v754 = vunpack.c.h.b16 %v132
    %v755 = vunpack.c.l.b16 %v133
    %v756 = vunpack.c.h.b16 %v133
    %v757 = vunpack.c.l.b16 %v134
    %v758 = vunpack.c.h.b16 %v134
    %v759 = vunpack.c.l.b16 %v135
    %v760 = vunpack.c.h.b16 %v135
    %v761 = vunpack.c.l.b16 %v136
    %v762 = vunpack.c.h.b16 %v136
    %v763 = vunpack.c.l.b16 %v137
    %v764 = vunpack.c.h.b16 %v137
    %v765 = vunpack.c.l.b16 %v138
    %v766 = vunpack.c.h.b16 %v138
    %v767 = vunpack.c.l.b16 %v139
    %v768 = vunpack.c.h.b16 %v139
    %v769 = vunpack.c.l.b16 %v140
    %v770 = vunpack.c.h.b16 %v140
    %v771 = vunpack.c.l.b16 %v141
    %v772 = vunpack.c.h.b16 %v141
    %v773 = vunpack.c.l.b16 %v142
    %v774 = vunpack.c.h.b16 %v142
    %v775 = vunpack.c.l.b16 %v143
    %v776 = vunpack.c.h.b16 %v143
    %v777 = vunpack.c.l.b16 %v144
    %v778 = vunpack.c.h.b16 %v144
    %v779 = vunpack.c.l.b16 %v145
    %v780 = vunpack.c.h.b16 %v145
    %v781 = vunpack.c.l.b16 %v146
    %v782 = vunpack.c.h.b16 %v146
    %v783 = vunpack.c.l.b16 %v147
    %v784 = vunpack.c.h.b16 %v147
    %v785 = vunpack.c.l.b16 %v148
    %v786 = vunpack.c.h.b16 %v148
    %v787 = vunpack.c.l.b16 %v149
    %v788 = vunpack.c.h.b16 %v149
    %v789 = vunpack.c.l.b16 %v150
    %v790 = vunpack.c.h.b16 %v150
    %v791 = vunpack.c.l.b16 %v151
    %v792 = vunpack.c.h.b16 %v151
    %v793 = vunpack.c.l.b16 %v152
    %v794 = vunpack.c.h.b16 %v152
    %v795 = vunpack.c.l.b16 %v153
    %v796 = vunpack.c.h.b16 %v153
    %v797 = vunpack.c.l.b16 %v154
    %v798 = vunpack.c.h.b16 %v154
    %v799 = vunpack.c.l.b16 %v155
    %v800 = vunpack.c.h.b16 %v155
    %v801 = vunpack.c.l.b16 %v156
    %v802 = vunpack.c.h.b16 %v156
    %v803 = vunpack.c.l.b16 %v157
    %v804 = vunpack.c.h.b16 %v157
    %v805 = vunpack.c.l.b16 %v158
    %v806 = vunpack.c.h.b16 %v158
    %v807 = vunpack.c.l.b16 %v159
    %v808 = vunpack.c.h.b16 %v159
    %v809 = vunpack.c.l.b16 %v160
    %v810 = vunpack.c.h.b16 %v160
    %v811 = vunpack.c.l.b16 %v161
    %v812 = vunpack.c.h.b16 %v161
    %v813 = vunpack.c.l.b16 %v162
    %v814 = vunpack.c.h.b16 %v162
    %v815 = vpack.c.b16 %v689, %v687
    %v816 = vpack.c.b16 %v690, %v688
    %v817 = vpack.c.b16 %v693, %v691
    %v818 = vpack.c.b16 %v694, %v692
    %v819 = vpack.c.b16 %v697, %v695
    %v820 = vpack.c.b16 %v698, %v696
    %v821 = vpack.c.b16 %v701, %v699
    %v822 = vpack.c.b16 %v702, %v700
    %v823 = vpack.c.b16 %v705, %v703
    %v824 = vpack.c.b16 %v706, %v704
    %v825 = vpack.c.b16 %v709, %v707
    %v826 = vpack.c.b16 %v710, %v708
    %v827 = vpack.c.b16 %v713, %v711
    %v828 = vpack.c.b16 %v714, %v712
    %v829 = vpack.c.b16 %v717, %v715
    %v830 = vpack.c.b16 %v718, %v716
    %v831 = vpack.c.b16 %v721, %v719
    %v832 = vpack.c.b16 %v722, %v720
    %v833 = vpack.c.b16 %v725, %v723
    %v834 = vpack.c.b16 %v726, %v724
    %v835 = vpack.c.b16 %v729, %v727
    %v836 = vpack.c.b16 %v730, %v728
    %v837 = vpack.c.b16 %v733, %v731
    %v838 = vpack.c.b16 %v734, %v732
    %v839 = vpack.c.b16 %v737, %v735
    %v840 = vpack.c.b16 %v738, %v736
    %v841 = vpack.c.b16 %v741, %v739
    %v842 = vpack.c.b16 %v742, %v740
    %v843 = vpack.c.b16 %v745, %v743
    %v844 = vpack.c.b16 %v746, %v744
    %v845 = vpack.c.b16 %v749, %v747
    %v846 = vpack.c.b16 %v750, %v748
    %v847 = vpack.c.b16 %v753, %v751
    %v848 = vpack.c.b16 %v754, %v752
    %v849 = vpack.c.b16 %v757, %v755
    %v850 = vpack.c.b16 %v758, %v756
    %v851 = vpack.c.b16 %v761, %v759
    %v852 = vpack.c.b16 %v762, %v760
    %v853 = vpack.c.b16 %v765, %v763
    %v854 = vpack.c.b16 %v766, %v764
    %v855 = vpack.c.b16 %v769, %v767
    %v856 = vpack.c.b16 %v770, %v768
    %v857 = vpack.c.b16 %v773, %v771
    %v858 = vpack.c.b16 %v774, %v772
    %v859 = vpack.c.b16 %v777, %v775
    %v860 = vpack.c.b16 %v778, %v776
    %v861 = vpack.c.b16 %v781, %v779
    %v862 = vpack.c.b16 %v782, %v780
    %v863 = vpack.c.b16 %v785, %v783
    %v864 = vpack.c.b16 %v786, %v784
    %v865 = vpack.c.b16 %v789, %v787
    %v866 = vpack.c.b16 %v790, %v788
    %v867 = vpack.c.b16 %v793, %v791
    %v868 = vpack.c.b16 %v794, %v792
    %v869 = vpack.c.b16 %v797, %v795
    %v870 = vpack.c.b16 %v798, %v796
    %v871 = vpack.c.b16 %v801, %v799
    %v872 = vpack.c.b16 %v802, %v800
    %v873 = vpack.c.b16 %v805, %v803
    %v874 = vpack.c.b16 %v806, %v804
    %v875 = vpack.c.b16 %v809, %v807
    %v876 = vpack.c.b16 %v810, %v808
    %v877 = vpack.c.b16 %v813, %v811
    %v878 = vpack.c.b16 %v814, %v812
    %943 = vmatprep.subr.bf16.mxu0 %v830
    %944 = vmatpush1.bf16.msra.mxu0 %v829
    %945 = vmatprep.subr.bf16.mxu0 %v828
    %946 = vmatpush1.bf16.msra.mxu0 %v827
    %947 = vmatprep.subr.bf16.mxu0 %v826
    %948 = vmatpush1.bf16.msra.mxu0 %v825
    %949 = vmatprep.subr.bf16.mxu0 %v824
    %950 = vmatpush1.bf16.msra.mxu0 %v823
    %951 = vmatprep.subr.bf16.mxu0 %v822
    %952 = vmatpush1.bf16.msra.mxu0 %v821
    %953 = vmatprep.subr.bf16.mxu0 %v820
    %954 = vmatpush1.bf16.msra.mxu0 %v819
    %955 = vmatprep.subr.bf16.mxu0 %v818
    %956 = vmatpush1.bf16.msra.mxu0 %v817
    %957 = vmatprep.subr.bf16.mxu0 %v816
    %958 = vmatpush1.bf16.msra.mxu0 %v815
    %959 = vmatprep.subr.bf16.mxu0 %v846
    %960 = vmatpush2.bf16.msra.mxu0 %v845
    %961 = vmatprep.subr.bf16.mxu0 %v844
    %962 = vmatpush2.bf16.msra.mxu0 %v843
    %963 = vmatprep.subr.bf16.mxu0 %v842
    %964 = vmatpush2.bf16.msra.mxu0 %v841
    %965 = vmatprep.subr.bf16.mxu0 %v840
    %966 = vmatpush2.bf16.msra.mxu0 %v839
    %967 = vmatprep.subr.bf16.mxu0 %v838
    %968 = vmatpush2.bf16.msra.mxu0 %v837
    %969 = vmatprep.subr.bf16.mxu0 %v836
    %970 = vmatpush2.bf16.msra.mxu0 %v835
    %971 = vmatprep.subr.bf16.mxu0 %v834
    %972 = vmatpush2.bf16.msra.mxu0 %v833
    %973 = vmatprep.subr.bf16.mxu0 %v832
    %974 = vmatpush2.bf16.msra.mxu0 %v831
    %975 = vmatprep.mubr.bf16.mxu0 %v616
    %976 = vmatmul.mubr.bf16.gmra.mxu0 %v609
    %v977 = vpop.f32.mrf.mxu0
    %v978 = vadd.f32 0.0, %v977
    %v979 = vpop.f32.mrf.mxu0
    %v980 = vadd.f32 0.0, %v979
    %v981 = vpop.f32.mrf.mxu0
    %v982 = vpop.f32.mrf.mxu0
    %983 = vdwg.mxu0
    %984 = vmatprep.subr.bf16.mxu0 %v862
    %985 = vmatpush1.bf16.msra.mxu0 %v861
    %986 = vmatprep.subr.bf16.mxu0 %v860
    %987 = vmatpush1.bf16.msra.mxu0 %v859
    %988 = vmatprep.subr.bf16.mxu0 %v858
    %989 = vmatpush1.bf16.msra.mxu0 %v857
    %990 = vmatprep.subr.bf16.mxu0 %v856
    %991 = vmatpush1.bf16.msra.mxu0 %v855
    %992 = vmatprep.subr.bf16.mxu0 %v854
    %993 = vmatpush1.bf16.msra.mxu0 %v853
    %994 = vmatprep.subr.bf16.mxu0 %v852
    %995 = vmatpush1.bf16.msra.mxu0 %v851
    %996 = vmatprep.subr.bf16.mxu0 %v850
    %997 = vmatpush1.bf16.msra.mxu0 %v849
    %998 = vmatprep.subr.bf16.mxu0 %v848
    %999 = vmatpush1.bf16.msra.mxu0 %v847
    %1000 = vmatprep.subr.bf16.mxu0 %v878
    %1001 = vmatpush2.bf16.msra.mxu0 %v877
    %1002 = vmatprep.subr.bf16.mxu0 %v876
    %1003 = vmatpush2.bf16.msra.mxu0 %v875
    %1004 = vmatprep.subr.bf16.mxu0 %v874
    %1005 = vmatpush2.bf16.msra.mxu0 %v873
    %1006 = vmatprep.subr.bf16.mxu0 %v872
    %1007 = vmatpush2.bf16.msra.mxu0 %v871
    %1008 = vmatprep.subr.bf16.mxu0 %v870
    %1009 = vmatpush2.bf16.msra.mxu0 %v869
    %1010 = vmatprep.subr.bf16.mxu0 %v868
    %1011 = vmatpush2.bf16.msra.mxu0 %v867
    %1012 = vmatprep.subr.bf16.mxu0 %v866
    %1013 = vmatpush2.bf16.msra.mxu0 %v865
    %1014 = vmatprep.subr.bf16.mxu0 %v864
    %1015 = vmatpush2.bf16.msra.mxu0 %v863
    %1016 = vmatprep.mubr.bf16.mxu0 %v618
    %1017 = vmatmul.mubr.bf16.gmra.mxu0 %v617
    %v1018 = vpop.f32.mrf.mxu0
    %v1019 = vadd.f32 %v978, %v1018
    %v1020 = vpop.f32.mrf.mxu0
    %v1021 = vadd.f32 %v980, %v1020
    %v1022 = vpop.f32.mrf.mxu0
    %v1023 = vpop.f32.mrf.mxu0
    %1024 = vdwg.mxu0
    %v1029 = vcombine.low %v588, %v590
    %v1031 = vunpack.c.l.s4 1966171168
    %v1032 = vunpack.c.0.s8 %v1031
    %v1033 = vlaneseq
    %v1034 = vshrl.u32 %v1033, 7
    %v1035 = vsub.s32 %v1032, %v1034
    %v1036 = vrot.slane %v1029, %v1035
    %v1038 = vunpack.c.l.s4 1966171168
    %v1039 = vunpack.c.0.s8 %v1038
    %v1040 = vlaneseq
    %v1041 = vshrl.u32 %v1040, 7
    %v1042 = vsub.s32 %v1039, %v1041
    %v1043 = vrot.slane %v1036, %v1042
    %v1044 = vcombine.low %v1019, %v1021
    %v1046 = vunpack.c.l.s4 1966171168
    %v1047 = vunpack.c.0.s8 %v1046
    %v1048 = vlaneseq
    %v1049 = vshrl.u32 %v1048, 7
    %v1050 = vsub.s32 %v1047, %v1049
    %v1051 = vrot.slane %v1044, %v1050
    %v1053 = vunpack.c.l.s4 1966171168
    %v1054 = vunpack.c.0.s8 %v1053
    %v1055 = vlaneseq
    %v1056 = vshrl.u32 %v1055, 7
    %v1057 = vsub.s32 %v1054, %v1056
    %v1058 = vrot.slane %v1051, %v1057
    %v1061 = vadd.f32 %v31, %v1043
    %v1062 = vadd.f32 %v32, %v1058
    %v1063 = vlaneseq
    %vm1064 = vcmp.ge.s32.totalorder %v1063, 0
    %vm1065 = vcmp.lt.s32.totalorder %v1063, 256
    %vm1066 = vmand %vm1064, %vm1065
    %1067 = vst.msk [vmem:[#allocation2] sm:$0x3] %vm1066, %v1061
    %1068 = vst.msk [vmem:[#allocation2 + $0x2] sm:$0x3] %vm1066, %v1062
    // Predicated region
    $region26: #{text_tower_forward.1} parent=1 // pred_check
      %p1069 = pneg %p21
    $region27: #{text_tower_forward.1} parent=1 // pred_check_branch
      %1071 = sbr.rel (%p1069) target = $region29
    $region28: #{text_tower_forward.1} parent=1 // pred_region
      %v1072 = vld [vmem:[%s2] sm:$0x3]
      %v1073 = vmax.f32 %v1072, 1e-09
      %v1074 = vrcp.pop %v1073
      %v1075 = vmul.f32 1.0, %v1074
      %v1078 = vunpack.c.l.s4 1966171168
      %v1079 = vunpack.c.0.s8 %v1078
      %v1080 = vlaneseq
      %v1081 = vshrl.u32 %v1080, 7
      %v1082 = vsub.s32 %v1079, %v1081
      %v1083 = vrot.slane %v1075, %v1082
      %v1084 = vcombine.high %v1083, %v1083
      %v1086 = vunpack.c.l.s4 1966171168
      %v1087 = vunpack.c.0.s8 %v1086
      %v1088 = vlaneseq
      %v1089 = vshrl.u32 %v1088, 7
      %v1090 = vsub.s32 %v1087, %v1089
      %v1091 = vrot.slane %v1083, %v1090
      %v1093 = vunpack.c.l.s4 1966171168
      %v1094 = vunpack.c.0.s8 %v1093
      %v1095 = vlaneseq
      %v1096 = vshrl.u32 %v1095, 7
      %v1097 = vsub.s32 %v1094, %v1096
      %v1098 = vrot.slane %v1084, %v1097
      %v1099 = vld [vmem:[#allocation2] sm:$0x3]
      %v1100 = vld [vmem:[#allocation2 + $0x2] sm:$0x3]
      %1101 = vset.pattern.permute.xlu0 0
      %1102 = vperm.xlu0 %1101, %v1091
      %v1103 = vpop.permute.xlu0 %1102
      %v1105 = vlaneseq
      %v1106 = vshrl.u32 %v1105, 7
      %v1107 = vsub.s32 0, %v1106
      %v1108 = vrot.slane %v1103, %v1107
      %1109 = vset.pattern.permute.xlu0 0
      %1110 = vperm.xlu0 %1109, %v1098
      %v1111 = vpop.permute.xlu0 %1110
      %v1113 = vlaneseq
      %v1114 = vshrl.u32 %v1113, 7
      %v1115 = vsub.s32 0, %v1114
      %v1116 = vrot.slane %v1111, %v1115
      %v1117 = vmul.f32 %v1099, %v1108
      %v1118 = vmul.f32 %v1100, %v1116
      %v1121 = vlaneseq
      %v1122 = vshrl.u32 %v1121, 7
      %v1123 = vsub.s32 0, %v1122
      %v1124 = vrot.slane %v1117, %v1123
      %v1125 = vlaneseq
      %v1126 = vshrl.u32 %v1125, 7
      %v1127 = vsub.s32 1, %v1126
      %v1128 = vrot.slane %v1117, %v1127
      %v1129 = vlaneseq
      %v1130 = vshrl.u32 %v1129, 7
      %v1131 = vsub.s32 0, %v1130
      %v1132 = vrot.slane %v1118, %v1131
      %v1133 = vlaneseq
      %v1134 = vshrl.u32 %v1133, 7
      %v1135 = vsub.s32 1, %v1134
      %v1136 = vrot.slane %v1118, %v1135
      %v1141 = vpack.c.bf16 %v1124, %v1124
      %v1142 = vpack.c.bf16 %v1128, %v1128
      %v1143 = vpack.c.bf16 %v1132, %v1132
      %v1144 = vpack.c.bf16 %v1136, %v1136
      %v1145 = vld [vmem:[%s3] sm:$0xff]
      %v1146 = vld [vmem:[%s3 + $0x8] sm:$0xff]
      %v1147 = vld [vmem:[%s3 + $0x10] sm:$0xff]
      %v1148 = vld [vmem:[%s3 + $0x18] sm:$0xff]
      %v1149 = vld [vmem:[%s3 + $0x20] sm:$0xff]
      %v1150 = vld [vmem:[%s3 + $0x28] sm:$0xff]
      %v1151 = vld [vmem:[%s3 + $0x30] sm:$0xff]
      %v1152 = vld [vmem:[%s3 + $0x38] sm:$0xff]
      %v1153 = vld [vmem:[%s3 + $0x40] sm:$0xff]
      %v1154 = vld [vmem:[%s3 + $0x48] sm:$0xff]
      %v1155 = vld [vmem:[%s3 + $0x50] sm:$0xff]
      %v1156 = vld [vmem:[%s3 + $0x58] sm:$0xff]
      %v1157 = vld [vmem:[%s3 + $0x60] sm:$0xff]
      %v1158 = vld [vmem:[%s3 + $0x68] sm:$0xff]
      %v1159 = vld [vmem:[%s3 + $0x70] sm:$0xff]
      %v1160 = vld [vmem:[%s3 + $0x78] sm:$0xff]
      %v1161 = vld [vmem:[%s3 + $0x80] sm:$0xff]
      %v1162 = vld [vmem:[%s3 + $0x88] sm:$0xff]
      %v1163 = vld [vmem:[%s3 + $0x90] sm:$0xff]
      %v1164 = vld [vmem:[%s3 + $0x98] sm:$0xff]
      %v1165 = vld [vmem:[%s3 + $0xa0] sm:$0xff]
      %v1166 = vld [vmem:[%s3 + $0xa8] sm:$0xff]
      %v1167 = vld [vmem:[%s3 + $0xb0] sm:$0xff]
      %v1168 = vld [vmem:[%s3 + $0xb8] sm:$0xff]
      %v1169 = vld [vmem:[%s3 + $0xc0] sm:$0xff]
      %v1170 = vld [vmem:[%s3 + $0xc8] sm:$0xff]
      %v1171 = vld [vmem:[%s3 + $0xd0] sm:$0xff]
      %v1172 = vld [vmem:[%s3 + $0xd8] sm:$0xff]
      %v1173 = vld [vmem:[%s3 + $0xe0] sm:$0xff]
      %v1174 = vld [vmem:[%s3 + $0xe8] sm:$0xff]
      %v1175 = vld [vmem:[%s3 + $0xf0] sm:$0xff]
      %v1176 = vld [vmem:[%s3 + $0xf8] sm:$0xff]
      %v1177 = vld [vmem:[%s3 + $0x100] sm:$0xff]
      %v1178 = vld [vmem:[%s3 + $0x108] sm:$0xff]
      %v1179 = vld [vmem:[%s3 + $0x110] sm:$0xff]
      %v1180 = vld [vmem:[%s3 + $0x118] sm:$0xff]
      %v1181 = vld [vmem:[%s3 + $0x120] sm:$0xff]
      %v1182 = vld [vmem:[%s3 + $0x128] sm:$0xff]
      %v1183 = vld [vmem:[%s3 + $0x130] sm:$0xff]
      %v1184 = vld [vmem:[%s3 + $0x138] sm:$0xff]
      %v1185 = vld [vmem:[%s3 + $0x140] sm:$0xff]
      %v1186 = vld [vmem:[%s3 + $0x148] sm:$0xff]
      %v1187 = vld [vmem:[%s3 + $0x150] sm:$0xff]
      %v1188 = vld [vmem:[%s3 + $0x158] sm:$0xff]
      %v1189 = vld [vmem:[%s3 + $0x160] sm:$0xff]
      %v1190 = vld [vmem:[%s3 + $0x168] sm:$0xff]
      %v1191 = vld [vmem:[%s3 + $0x170] sm:$0xff]
      %v1192 = vld [vmem:[%s3 + $0x178] sm:$0xff]
      %v1193 = vld [vmem:[%s3 + $0x180] sm:$0xff]
      %v1194 = vld [vmem:[%s3 + $0x188] sm:$0xff]
      %v1195 = vld [vmem:[%s3 + $0x190] sm:$0xff]
      %v1196 = vld [vmem:[%s3 + $0x198] sm:$0xff]
      %v1197 = vld [vmem:[%s3 + $0x1a0] sm:$0xff]
      %v1198 = vld [vmem:[%s3 + $0x1a8] sm:$0xff]
      %v1199 = vld [vmem:[%s3 + $0x1b0] sm:$0xff]
      %v1200 = vld [vmem:[%s3 + $0x1b8] sm:$0xff]
      %v1201 = vld [vmem:[%s3 + $0x1c0] sm:$0xff]
      %v1202 = vld [vmem:[%s3 + $0x1c8] sm:$0xff]
      %v1203 = vld [vmem:[%s3 + $0x1d0] sm:$0xff]
      %v1204 = vld [vmem:[%s3 + $0x1d8] sm:$0xff]
      %v1205 = vld [vmem:[%s3 + $0x1e0] sm:$0xff]
      %v1206 = vld [vmem:[%s3 + $0x1e8] sm:$0xff]
      %v1207 = vld [vmem:[%s3 + $0x1f0] sm:$0xff]
      %v1208 = vld [vmem:[%s3 + $0x1f8] sm:$0xff]
      %v1209 = vld [vmem:[%s4] sm:$0xf]
      %v1211 = vlaneseq
      %v1212 = vshrl.u32 %v1211, 7
      %v1213 = vsub.s32 0, %v1212
      %v1214 = vrot.slane %v1209, %v1213
      %v1215 = vlaneseq
      %v1216 = vshrl.u32 %v1215, 7
      %v1217 = vsub.s32 1, %v1216
      %v1218 = vrot.slane %v1209, %v1217
      %v1219 = vlaneseq
      %v1220 = vshrl.u32 %v1219, 7
      %v1221 = vsub.s32 2, %v1220
      %v1222 = vrot.slane %v1209, %v1221
      %v1223 = vlaneseq
      %v1224 = vshrl.u32 %v1223, 7
      %v1225 = vsub.s32 3, %v1224
      %v1226 = vrot.slane %v1209, %v1225
      %v1235 = vunpack.c.l.b16 %v1141
      %v1236 = vunpack.c.l.b16 %v1142
      %v1237 = vunpack.c.l.b16 %v1143
      %v1238 = vunpack.c.l.b16 %v1144
      %v1239 = vrot.slane %v1237, 7
      %vm1240 = vcmask 1041409
      %v1241 = vsel %vm1240, %v1239, %v1235
      %v1242 = vrot.slane %v1238, 7
      %v1243 = vsel %vm1240, %v1242, %v1236
      %v1244 = vpack.c.b16 %v1241, %v1241
      %v1245 = vpack.c.b16 %v1243, %v1243
      %v1312 = vunpack.c.l.b16 %v1145
      %v1313 = vunpack.c.h.b16 %v1145
      %v1314 = vunpack.c.l.b16 %v1146
      %v1315 = vunpack.c.h.b16 %v1146
      %v1316 = vunpack.c.l.b16 %v1147
      %v1317 = vunpack.c.h.b16 %v1147
      %v1318 = vunpack.c.l.b16 %v1148
      %v1319 = vunpack.c.h.b16 %v1148
      %v1320 = vunpack.c.l.b16 %v1149
      %v1321 = vunpack.c.h.b16 %v1149
      %v1322 = vunpack.c.l.b16 %v1150
      %v1323 = vunpack.c.h.b16 %v1150
      %v1324 = vunpack.c.l.b16 %v1151
      %v1325 = vunpack.c.h.b16 %v1151
      %v1326 = vunpack.c.l.b16 %v1152
      %v1327 = vunpack.c.h.b16 %v1152
      %v1328 = vunpack.c.l.b16 %v1153
      %v1329 = vunpack.c.h.b16 %v1153
      %v1330 = vunpack.c.l.b16 %v1154
      %v1331 = vunpack.c.h.b16 %v1154
      %v1332 = vunpack.c.l.b16 %v1155
      %v1333 = vunpack.c.h.b16 %v1155
      %v1334 = vunpack.c.l.b16 %v1156
      %v1335 = vunpack.c.h.b16 %v1156
      %v1336 = vunpack.c.l.b16 %v1157
      %v1337 = vunpack.c.h.b16 %v1157
      %v1338 = vunpack.c.l.b16 %v1158
      %v1339 = vunpack.c.h.b16 %v1158
      %v1340 = vunpack.c.l.b16 %v1159
      %v1341 = vunpack.c.h.b16 %v1159
      %v1342 = vunpack.c.l.b16 %v1160
      %v1343 = vunpack.c.h.b16 %v1160
      %v1344 = vunpack.c.l.b16 %v1161
      %v1345 = vunpack.c.h.b16 %v1161
      %v1346 = vunpack.c.l.b16 %v1162
      %v1347 = vunpack.c.h.b16 %v1162
      %v1348 = vunpack.c.l.b16 %v1163
      %v1349 = vunpack.c.h.b16 %v1163
      %v1350 = vunpack.c.l.b16 %v1164
      %v1351 = vunpack.c.h.b16 %v1164
      %v1352 = vunpack.c.l.b16 %v1165
      %v1353 = vunpack.c.h.b16 %v1165
      %v1354 = vunpack.c.l.b16 %v1166
      %v1355 = vunpack.c.h.b16 %v1166
      %v1356 = vunpack.c.l.b16 %v1167
      %v1357 = vunpack.c.h.b16 %v1167
      %v1358 = vunpack.c.l.b16 %v1168
      %v1359 = vunpack.c.h.b16 %v1168
      %v1360 = vunpack.c.l.b16 %v1169
      %v1361 = vunpack.c.h.b16 %v1169
      %v1362 = vunpack.c.l.b16 %v1170
      %v1363 = vunpack.c.h.b16 %v1170
      %v1364 = vunpack.c.l.b16 %v1171
      %v1365 = vunpack.c.h.b16 %v1171
      %v1366 = vunpack.c.l.b16 %v1172
      %v1367 = vunpack.c.h.b16 %v1172
      %v1368 = vunpack.c.l.b16 %v1173
      %v1369 = vunpack.c.h.b16 %v1173
      %v1370 = vunpack.c.l.b16 %v1174
      %v1371 = vunpack.c.h.b16 %v1174
      %v1372 = vunpack.c.l.b16 %v1175
      %v1373 = vunpack.c.h.b16 %v1175
      %v1374 = vunpack.c.l.b16 %v1176
      %v1375 = vunpack.c.h.b16 %v1176
      %v1376 = vunpack.c.l.b16 %v1177
      %v1377 = vunpack.c.h.b16 %v1177
      %v1378 = vunpack.c.l.b16 %v1178
      %v1379 = vunpack.c.h.b16 %v1178
      %v1380 = vunpack.c.l.b16 %v1179
      %v1381 = vunpack.c.h.b16 %v1179
      %v1382 = vunpack.c.l.b16 %v1180
      %v1383 = vunpack.c.h.b16 %v1180
      %v1384 = vunpack.c.l.b16 %v1181
      %v1385 = vunpack.c.h.b16 %v1181
      %v1386 = vunpack.c.l.b16 %v1182
      %v1387 = vunpack.c.h.b16 %v1182
      %v1388 = vunpack.c.l.b16 %v1183
      %v1389 = vunpack.c.h.b16 %v1183
      %v1390 = vunpack.c.l.b16 %v1184
      %v1391 = vunpack.c.h.b16 %v1184
      %v1392 = vunpack.c.l.b16 %v1185
      %v1393 = vunpack.c.h.b16 %v1185
      %v1394 = vunpack.c.l.b16 %v1186
      %v1395 = vunpack.c.h.b16 %v1186
      %v1396 = vunpack.c.l.b16 %v1187
      %v1397 = vunpack.c.h.b16 %v1187
      %v1398 = vunpack.c.l.b16 %v1188
      %v1399 = vunpack.c.h.b16 %v1188
      %v1400 = vunpack.c.l.b16 %v1189
      %v1401 = vunpack.c.h.b16 %v1189
      %v1402 = vunpack.c.l.b16 %v1190
      %v1403 = vunpack.c.h.b16 %v1190
      %v1404 = vunpack.c.l.b16 %v1191
      %v1405 = vunpack.c.h.b16 %v1191
      %v1406 = vunpack.c.l.b16 %v1192
      %v1407 = vunpack.c.h.b16 %v1192
      %v1408 = vunpack.c.l.b16 %v1193
      %v1409 = vunpack.c.h.b16 %v1193
      %v1410 = vunpack.c.l.b16 %v1194
      %v1411 = vunpack.c.h.b16 %v1194
      %v1412 = vunpack.c.l.b16 %v1195
      %v1413 = vunpack.c.h.b16 %v1195
      %v1414 = vunpack.c.l.b16 %v1196
      %v1415 = vunpack.c.h.b16 %v1196
      %v1416 = vunpack.c.l.b16 %v1197
      %v1417 = vunpack.c.h.b16 %v1197
      %v1418 = vunpack.c.l.b16 %v1198
      %v1419 = vunpack.c.h.b16 %v1198
      %v1420 = vunpack.c.l.b16 %v1199
      %v1421 = vunpack.c.h.b16 %v1199
      %v1422 = vunpack.c.l.b16 %v1200
      %v1423 = vunpack.c.h.b16 %v1200
      %v1424 = vunpack.c.l.b16 %v1201
      %v1425 = vunpack.c.h.b16 %v1201
      %v1426 = vunpack.c.l.b16 %v1202
      %v1427 = vunpack.c.h.b16 %v1202
      %v1428 = vunpack.c.l.b16 %v1203
      %v1429 = vunpack.c.h.b16 %v1203
      %v1430 = vunpack.c.l.b16 %v1204
      %v1431 = vunpack.c.h.b16 %v1204
      %v1432 = vunpack.c.l.b16 %v1205
      %v1433 = vunpack.c.h.b16 %v1205
      %v1434 = vunpack.c.l.b16 %v1206
      %v1435 = vunpack.c.h.b16 %v1206
      %v1436 = vunpack.c.l.b16 %v1207
      %v1437 = vunpack.c.h.b16 %v1207
      %v1438 = vunpack.c.l.b16 %v1208
      %v1439 = vunpack.c.h.b16 %v1208
      %v1440 = vpack.c.b16 %v1316, %v1312
      %v1441 = vpack.c.b16 %v1317, %v1313
      %v1442 = vpack.c.b16 %v1318, %v1314
      %v1443 = vpack.c.b16 %v1319, %v1315
      %v1444 = vpack.c.b16 %v1324, %v1320
      %v1445 = vpack.c.b16 %v1325, %v1321
      %v1446 = vpack.c.b16 %v1326, %v1322
      %v1447 = vpack.c.b16 %v1327, %v1323
      %v1448 = vpack.c.b16 %v1332, %v1328
      %v1449 = vpack.c.b16 %v1333, %v1329
      %v1450 = vpack.c.b16 %v1334, %v1330
      %v1451 = vpack.c.b16 %v1335, %v1331
      %v1452 = vpack.c.b16 %v1340, %v1336
      %v1453 = vpack.c.b16 %v1341, %v1337
      %v1454 = vpack.c.b16 %v1342, %v1338
      %v1455 = vpack.c.b16 %v1343, %v1339
      %v1456 = vpack.c.b16 %v1348, %v1344
      %v1457 = vpack.c.b16 %v1349, %v1345
      %v1458 = vpack.c.b16 %v1350, %v1346
      %v1459 = vpack.c.b16 %v1351, %v1347
      %v1460 = vpack.c.b16 %v1356, %v1352
      %v1461 = vpack.c.b16 %v1357, %v1353
      %v1462 = vpack.c.b16 %v1358, %v1354
      %v1463 = vpack.c.b16 %v1359, %v1355
      %v1464 = vpack.c.b16 %v1364, %v1360
      %v1465 = vpack.c.b16 %v1365, %v1361
      %v1466 = vpack.c.b16 %v1366, %v1362
      %v1467 = vpack.c.b16 %v1367, %v1363
      %v1468 = vpack.c.b16 %v1372, %v1368
      %v1469 = vpack.c.b16 %v1373, %v1369
      %v1470 = vpack.c.b16 %v1374, %v1370
      %v1471 = vpack.c.b16 %v1375, %v1371
      %v1472 = vpack.c.b16 %v1380, %v1376
      %v1473 = vpack.c.b16 %v1381, %v1377
      %v1474 = vpack.c.b16 %v1382, %v1378
      %v1475 = vpack.c.b16 %v1383, %v1379
      %v1476 = vpack.c.b16 %v1388, %v1384
      %v1477 = vpack.c.b16 %v1389, %v1385
      %v1478 = vpack.c.b16 %v1390, %v1386
      %v1479 = vpack.c.b16 %v1391, %v1387
      %v1480 = vpack.c.b16 %v1396, %v1392
      %v1481 = vpack.c.b16 %v1397, %v1393
      %v1482 = vpack.c.b16 %v1398, %v1394
      %v1483 = vpack.c.b16 %v1399, %v1395
      %v1484 = vpack.c.b16 %v1404, %v1400
      %v1485 = vpack.c.b16 %v1405, %v1401
      %v1486 = vpack.c.b16 %v1406, %v1402
      %v1487 = vpack.c.b16 %v1407, %v1403
      %v1488 = vpack.c.b16 %v1412, %v1408
      %v1489 = vpack.c.b16 %v1413, %v1409
      %v1490 = vpack.c.b16 %v1414, %v1410
      %v1491 = vpack.c.b16 %v1415, %v1411
      %v1492 = vpack.c.b16 %v1420, %v1416
      %v1493 = vpack.c.b16 %v1421, %v1417
      %v1494 = vpack.c.b16 %v1422, %v1418
      %v1495 = vpack.c.b16 %v1423, %v1419
      %v1496 = vpack.c.b16 %v1428, %v1424
      %v1497 = vpack.c.b16 %v1429, %v1425
      %v1498 = vpack.c.b16 %v1430, %v1426
      %v1499 = vpack.c.b16 %v1431, %v1427
      %v1500 = vpack.c.b16 %v1436, %v1432
      %v1501 = vpack.c.b16 %v1437, %v1433
      %v1502 = vpack.c.b16 %v1438, %v1434
      %v1503 = vpack.c.b16 %v1439, %v1435
      %1568 = vmatprep.subr.bf16.mxu0 %v1469
      %1569 = vmatpush1.bf16.msra.mxu0 %v1468
      %1570 = vmatprep.subr.bf16.mxu0 %v1465
      %1571 = vmatpush1.bf16.msra.mxu0 %v1464
      %1572 = vmatprep.subr.bf16.mxu0 %v1461
      %1573 = vmatpush1.bf16.msra.mxu0 %v1460
      %1574 = vmatprep.subr.bf16.mxu0 %v1457
      %1575 = vmatpush1.bf16.msra.mxu0 %v1456
      %1576 = vmatprep.subr.bf16.mxu0 %v1453
      %1577 = vmatpush1.bf16.msra.mxu0 %v1452
      %1578 = vmatprep.subr.bf16.mxu0 %v1449
      %1579 = vmatpush1.bf16.msra.mxu0 %v1448
      %1580 = vmatprep.subr.bf16.mxu0 %v1445
      %1581 = vmatpush1.bf16.msra.mxu0 %v1444
      %1582 = vmatprep.subr.bf16.mxu0 %v1441
      %1583 = vmatpush1.bf16.msra.mxu0 %v1440
      %1584 = vmatprep.subr.bf16.mxu0 %v1501
      %1585 = vmatpush2.bf16.msra.mxu0 %v1500
      %1586 = vmatprep.subr.bf16.mxu0 %v1497
      %1587 = vmatpush2.bf16.msra.mxu0 %v1496
      %1588 = vmatprep.subr.bf16.mxu0 %v1493
      %1589 = vmatpush2.bf16.msra.mxu0 %v1492
      %1590 = vmatprep.subr.bf16.mxu0 %v1489
      %1591 = vmatpush2.bf16.msra.mxu0 %v1488
      %1592 = vmatprep.subr.bf16.mxu0 %v1485
      %1593 = vmatpush2.bf16.msra.mxu0 %v1484
      %1594 = vmatprep.subr.bf16.mxu0 %v1481
      %1595 = vmatpush2.bf16.msra.mxu0 %v1480
      %1596 = vmatprep.subr.bf16.mxu0 %v1477
      %1597 = vmatpush2.bf16.msra.mxu0 %v1476
      %1598 = vmatprep.subr.bf16.mxu0 %v1473
      %1599 = vmatpush2.bf16.msra.mxu0 %v1472
      %1600 = vmatprep.mubr.bf16.mxu0 %v1245
      %1601 = vmatmul.mubr.bf16.gmra.mxu0 %v1244
      %v1602 = vpop.f32.mrf.mxu0
      %v1603 = vadd.f32 %v1214, %v1602
      %v1604 = vpop.f32.mrf.mxu0
      %v1605 = vadd.f32 %v1218, %v1604
      %v1606 = vpop.f32.mrf.mxu0
      %v1607 = vpop.f32.mrf.mxu0
      %1608 = vdwg.mxu0
      %1609 = vmatprep.subr.bf16.mxu0 %v1471
      %1610 = vmatpush1.bf16.msra.mxu0 %v1470
      %1611 = vmatprep.subr.bf16.mxu0 %v1467
      %1612 = vmatpush1.bf16.msra.mxu0 %v1466
      %1613 = vmatprep.subr.bf16.mxu0 %v1463
      %1614 = vmatpush1.bf16.msra.mxu0 %v1462
      %1615 = vmatprep.subr.bf16.mxu0 %v1459
      %1616 = vmatpush1.bf16.msra.mxu0 %v1458
      %1617 = vmatprep.subr.bf16.mxu0 %v1455
      %1618 = vmatpush1.bf16.msra.mxu0 %v1454
      %1619 = vmatprep.subr.bf16.mxu0 %v1451
      %1620 = vmatpush1.bf16.msra.mxu0 %v1450
      %1621 = vmatprep.subr.bf16.mxu0 %v1447
      %1622 = vmatpush1.bf16.msra.mxu0 %v1446
      %1623 = vmatprep.subr.bf16.mxu0 %v1443
      %1624 = vmatpush1.bf16.msra.mxu0 %v1442
      %1625 = vmatprep.subr.bf16.mxu0 %v1503
      %1626 = vmatpush2.bf16.msra.mxu0 %v1502
      %1627 = vmatprep.subr.bf16.mxu0 %v1499
      %1628 = vmatpush2.bf16.msra.mxu0 %v1498
      %1629 = vmatprep.subr.bf16.mxu0 %v1495
      %1630 = vmatpush2.bf16.msra.mxu0 %v1494
      %1631 = vmatprep.subr.bf16.mxu0 %v1491
      %1632 = vmatpush2.bf16.msra.mxu0 %v1490
      %1633 = vmatprep.subr.bf16.mxu0 %v1487
      %1634 = vmatpush2.bf16.msra.mxu0 %v1486
      %1635 = vmatprep.subr.bf16.mxu0 %v1483
      %1636 = vmatpush2.bf16.msra.mxu0 %v1482
      %1637 = vmatprep.subr.bf16.mxu0 %v1479
      %1638 = vmatpush2.bf16.msra.mxu0 %v1478
      %1639 = vmatprep.subr.bf16.mxu0 %v1475
      %1640 = vmatpush2.bf16.msra.mxu0 %v1474
      %1641 = vmatprep.mubr.bf16.mxu0 %v1245
      %1642 = vmatmul.mubr.bf16.gmra.mxu0 %v1244
      %v1643 = vpop.f32.mrf.mxu0
      %v1644 = vadd.f32 %v1222, %v1643
      %v1645 = vpop.f32.mrf.mxu0
      %v1646 = vadd.f32 %v1226, %v1645
      %v1647 = vpop.f32.mrf.mxu0
      %v1648 = vpop.f32.mrf.mxu0
      %1649 = vdwg.mxu0
      %v1654 = vcombine.low %v1603, %v1605
      %v1655 = vcombine.low %v1644, %v1646
      %v1657 = vunpack.c.l.s4 1983009808
      %v1658 = vunpack.c.0.s8 %v1657
      %v1659 = vlaneseq
      %v1660 = vshrl.u32 %v1659, 7
      %v1661 = vsub.s32 %v1658, %v1660
      %v1662 = vrot.slane %v1654, %v1661
      %v1664 = vunpack.c.l.s4 1983009808
      %v1665 = vunpack.c.0.s8 %v1664
      %v1666 = vlaneseq
      %v1667 = vshrl.u32 %v1666, 7
      %v1668 = vsub.s32 %v1665, %v1667
      %v1669 = vrot.slane %v1655, %v1668
      %v1670 = vcombine.low %v1662, %v1669
      %1672 = vst [vmem:[#allocation3] sm:$0xff] %v1670
    $region29: #{text_tower_forward.1} parent=1 // pred_fallthru
      _
    // Predicated region
    $region30: #{text_tower_forward.1} parent=1 // pred_check
      _
    $region31: #{text_tower_forward.1} parent=1 // pred_check_branch
      %1674 = sbr.rel (0) target = $region33
    $region32: #{text_tower_forward.1} parent=1 // pred_region
      %s1676 = ssub.s32 128, 128
      %1677 = vsyncadd [#allocation4], %s1676
      %s1679 = sshll.u32 [#allocation3], 4
      %s1680 = int_to_ptr.vmem [resolvable:$true] %s1679
      %1682 = dma.vmem_to_hbm [thread:$0]  %s1680, 128, %s5, [#allocation4]
    $region33: #{text_tower_forward.1} parent=1 // pred_fallthru
      _
    // Predicated region
    $region34: #{text_tower_forward.1} parent=1 // pred_check
      _
    $region35: #{text_tower_forward.1} parent=1 // pred_check_branch
      %1684 = sbr.rel (0) target = $region37
    $region36: #{text_tower_forward.1} parent=1 // pred_region
      %1685 = dma.done [#allocation4], 128
    $region37: #{text_tower_forward.1} parent=1 // pred_fallthru
      _
    %1686 = vsyncpa [#allocation4], 1

</llo_original>
